<compile_context>
chip_gen: v7x
topology: tpu7x:2x2x1
jax: 0.10.0
libtpu: 0.0.40
codegen_flags: <defaults>
</compile_context>

<pallas_src>
import jax
import jax.numpy as jnp
from jax.experimental import pallas as pl
from jax.experimental.pallas import tpu as pltpu


def film_kernel(task_ref, w1_ref, b1_ref, w2_ref, b2_ref, out_ref):
    t = task_ref[...]

    # Fused layer 1 for both branches: (tb, d_input) @ (d_input, 2H) -> (tb, 2H), f32 acc.
    h = jnp.dot(t, w1_ref[...], preferred_element_type=jnp.float32) + b1_ref[...]
    h = jnp.maximum(h, 0.0)  # activation='relu', kept in f32 (v5e-friendly)

    # Fused layer 2 via block-diagonal W2: (tb, 2H) @ (2H, 2M) -> (tb, 2M).
    # Columns [0, M) are gamma, [M, 2M) are beta.
    o = jnp.dot(h.astype(w2_ref.dtype), w2_ref[...],
                preferred_element_type=jnp.float32) + b2_ref[...]

    out_ref[...] = o.astype(out_ref.dtype)


def film_shift_scale(task, params, *, compute_dtype=None):
    """task: (B, d_input). params: dict of weights (in,out) and biases (1,out).

    Returns (gamma, beta), each (B, d_model), in task.dtype.
    compute_dtype: optional MXU operand dtype (e.g. jnp.bfloat16); accumulation stays f32.
    """
    B, d_input = task.shape
    d_hidden = params["w1g"].shape[1]
    d_model = params["w2g"].shape[1]

    # ---- pack parameters (in a real model: pre-pack once, outside the step fn) ----
    w1 = jnp.concatenate([params["w1g"], params["w1b"]], axis=1)      # (d_input, 2H)
    b1 = jnp.concatenate([params["b1g"], params["b1b"]], axis=1)      # (1, 2H)
    zeros = jnp.zeros((d_hidden, d_model), params["w2g"].dtype)
    w2 = jnp.block([[params["w2g"], zeros],
                    [zeros, params["w2b"]]])                          # (2H, 2M) block-diag
    b2 = jnp.concatenate([params["b2g"], params["b2b"]], axis=1)      # (1, 2M)

    task_c = task
    if compute_dtype is not None:
        task_c = task.astype(compute_dtype)
        w1 = w1.astype(compute_dtype)
        w2 = w2.astype(compute_dtype)
        # biases stay f32: added after the f32-accumulated dot

    # ---- grid over batch; weights/biases resident across the grid ----
    tb = B if B <= 128 else 128
    grid = (pl.cdiv(B, tb),)

    out = pl.pallas_call(
        film_kernel,
        out_shape=jax.ShapeDtypeStruct((B, 2 * d_model), task.dtype),
        grid=grid,
        in_specs=[
            pl.BlockSpec((tb, d_input), lambda i: (i, 0)),            # task tile
            pl.BlockSpec((d_input, 2 * d_hidden), lambda i: (0, 0)),  # W1 (resident)
            pl.BlockSpec((1, 2 * d_hidden), lambda i: (0, 0)),        # b1 (resident)
            pl.BlockSpec((2 * d_hidden, 2 * d_model), lambda i: (0, 0)),  # W2 (resident)
            pl.BlockSpec((1, 2 * d_model), lambda i: (0, 0)),         # b2 (resident)
        ],
        out_specs=pl.BlockSpec((tb, 2 * d_model), lambda i: (i, 0)),  # gamma|beta slab
        compiler_params=pltpu.CompilerParams(
            dimension_semantics=("parallel",),   # v7x megacore splits batch tiles
        ),
    )(task_c, w1, b1, w2, b2)

    gamma = out[:, :d_model]
    beta = out[:, d_model:]
    return gamma, beta
    # TODO(synk): at production sizes (d_hidden ~ 4k) tile the reduction axes
    # ("arbitrary" K grid axis + f32 VMEM accumulator) and keep weights bf16 so the
    # resident-weight scheme fits v7x's 64 MiB VMEM.


def init_params(key, d_input, d_model, d_hidden, dtype=jnp.float32):
    ks = jax.random.split(key, 8)

    def lin(kw, kb, fan_in, fan_out):
        bound = 1.0 / jnp.sqrt(fan_in)
        w = jax.random.uniform(kw, (fan_in, fan_out), dtype, -bound, bound)
        b = jax.random.uniform(kb, (1, fan_out), dtype, -bound, bound)
        return w, b

    w1g, b1g = lin(ks[0], ks[1], d_input, d_hidden)
    w2g, b2g = lin(ks[2], ks[3], d_hidden, d_model)
    w1b, b1b = lin(ks[4], ks[5], d_input, d_hidden)
    w2b, b2b = lin(ks[6], ks[7], d_hidden, d_model)
    return dict(w1g=w1g, b1g=b1g, w2g=w2g, b2g=b2g,
                w1b=w1b, b1b=b1b, w2b=w2b, b2b=b2b)


def film_reference(task, p):
    hg = jnp.maximum(task @ p["w1g"] + p["b1g"], 0.0)
    gamma = hg @ p["w2g"] + p["b2g"]
    hb = jnp.maximum(task @ p["w1b"] + p["b1b"], 0.0)
    beta = hb @ p["w2b"] + p["b2b"]
    return gamma, beta


if __name__ == "__main__":
    B, d_input, d_model, d_hidden = 2, 8, 16, 32

    key = jax.random.PRNGKey(0)
    k_task, k_params = jax.random.split(key)
    task = jax.random.normal(k_task, (B, d_input), dtype=jnp.float32)
    params = init_params(k_params, d_input, d_model, d_hidden)

    gamma, beta = film_shift_scale(task, params)
    jax.block_until_ready((gamma, beta))

    g_ref, b_ref = film_reference(task, params)
    assert gamma.shape == (B, d_model) and beta.shape == (B, d_model)
    assert jnp.allclose(gamma, g_ref, atol=1e-5), "gamma mismatch"
    assert jnp.allclose(beta, b_ref, atol=1e-5), "beta mismatch"

    # bf16 MXU-operand path (f32 accumulation) also runs; looser tolerance expected.
    gamma_bf, beta_bf = film_shift_scale(task, params, compute_dtype=jnp.bfloat16)
    jax.block_until_ready((gamma_bf, beta_bf))
    assert jnp.allclose(gamma_bf, g_ref, atol=5e-2), "bf16 gamma mismatch"
    assert jnp.allclose(beta_bf, b_ref, atol=5e-2), "bf16 beta mismatch"

    print("KERNEL_OK")
</pallas_src>

<mosaic_0001>
module attributes {stable_mosaic.version = 11 : i64} {
  func.func @film_kernel(%arg0: i32, %arg1: memref<2x8xf32, #tpu.memory_space<vmem>>, %arg2: memref<8x64xf32, #tpu.memory_space<vmem>>, %arg3: memref<1x64xf32, #tpu.memory_space<vmem>>, %arg4: memref<64x32xf32, #tpu.memory_space<vmem>>, %arg5: memref<1x32xf32, #tpu.memory_space<vmem>>, %arg6: memref<2x32xf32, #tpu.memory_space<vmem>>) attributes {dimension_semantics = [#tpu.dimension_semantics<parallel>], iteration_bounds = array<i64: 1>, scalar_prefetch = 0 : i64, scratch_operands = 0 : i64, tpu.core_type = #tpu.core_type<tc>, window_params = [{transform_indices = @transform_0, window_bounds = array<i64: 2, 8>}, {pipeline_mode = #tpu.pipeline_mode<synchronous>, transform_indices = @transform_1, window_bounds = array<i64: 8, 64>}, {pipeline_mode = #tpu.pipeline_mode<synchronous>, transform_indices = @transform_2, window_bounds = array<i64: 1, 64>}, {pipeline_mode = #tpu.pipeline_mode<synchronous>, transform_indices = @transform_3, window_bounds = array<i64: 64, 32>}, {pipeline_mode = #tpu.pipeline_mode<synchronous>, transform_indices = @transform_4, window_bounds = array<i64: 1, 32>}, {transform_indices = @transform_5, window_bounds = array<i64: 2, 32>}]} {
    %c0 = arith.constant 0 : index
    %c0_0 = arith.constant 0 : index
    %0 = vector.load %arg1[%c0, %c0_0] : memref<2x8xf32, #tpu.memory_space<vmem>>, vector<2x8xf32>
    %c0_1 = arith.constant 0 : index
    %c0_2 = arith.constant 0 : index
    %1 = vector.load %arg2[%c0_1, %c0_2] : memref<8x64xf32, #tpu.memory_space<vmem>>, vector<8x64xf32>
    %cst = arith.constant dense<0.000000e+00> : vector<2x64xf32>
    %2 = tpu.matmul %0, %1, %cst {dimension_numbers = #tpu.dot_dimension_numbers<[1], [0], [0], [1], [0, 0, 1, 1], [], []>} : vector<2x8xf32>, vector<8x64xf32>, vector<2x64xf32> -> vector<2x64xf32>
    %c0_3 = arith.constant 0 : index
    %c0_4 = arith.constant 0 : index
    %3 = vector.load %arg3[%c0_3, %c0_4] : memref<1x64xf32, #tpu.memory_space<vmem>>, vector<1x64xf32>
    %4 = vector.broadcast %3 : vector<1x64xf32> to vector<2x64xf32>
    %5 = arith.addf %2, %4 : vector<2x64xf32>
    %cst_5 = arith.constant 0.000000e+00 : f32
    %6 = vector.broadcast %cst_5 : f32 to vector<2x64xf32>
    %7 = arith.maximumf %5, %6 : vector<2x64xf32>
    %c0_6 = arith.constant 0 : index
    %c0_7 = arith.constant 0 : index
    %8 = vector.load %arg4[%c0_6, %c0_7] : memref<64x32xf32, #tpu.memory_space<vmem>>, vector<64x32xf32>
    %cst_8 = arith.constant dense<0.000000e+00> : vector<2x32xf32>
    %9 = tpu.matmul %7, %8, %cst_8 {dimension_numbers = #tpu.dot_dimension_numbers<[1], [0], [0], [1], [0, 0, 1, 1], [], []>} : vector<2x64xf32>, vector<64x32xf32>, vector<2x32xf32> -> vector<2x32xf32>
    %c0_9 = arith.constant 0 : index
    %c0_10 = arith.constant 0 : index
    %10 = vector.load %arg5[%c0_9, %c0_10] : memref<1x32xf32, #tpu.memory_space<vmem>>, vector<1x32xf32>
    %11 = vector.broadcast %10 : vector<1x32xf32> to vector<2x32xf32>
    %12 = arith.addf %9, %11 : vector<2x32xf32>
    %c0_11 = arith.constant 0 : index
    %c0_12 = arith.constant 0 : index
    %13 = vector.load %arg6[%c0_11, %c0_12] : memref<2x32xf32, #tpu.memory_space<vmem>>, vector<2x32xf32>
    tpu.vector_store %arg6[%c0_11, %c0_12], %12 {strides = array<i32>} : memref<2x32xf32, #tpu.memory_space<vmem>>, vector<2x32xf32>,
    return
  }
  func.func @transform_0(%arg0: i32) -> (i32, i32) {
    %c0_i32 = arith.constant 0 : i32
    %c0_i32_0 = arith.constant 0 : i32
    return %arg0, %c0_i32 : i32, i32
  }
  func.func @transform_1(%arg0: i32) -> (i32, i32) {
    %c0_i32 = arith.constant 0 : i32
    %c0_i32_0 = arith.constant 0 : i32
    %c0_i32_1 = arith.constant 0 : i32
    return %c0_i32, %c0_i32_0 : i32, i32
  }
  func.func @transform_2(%arg0: i32) -> (i32, i32) {
    %c0_i32 = arith.constant 0 : i32
    %c0_i32_0 = arith.constant 0 : i32
    %c0_i32_1 = arith.constant 0 : i32
    return %c0_i32, %c0_i32_0 : i32, i32
  }
  func.func @transform_3(%arg0: i32) -> (i32, i32) {
    %c0_i32 = arith.constant 0 : i32
    %c0_i32_0 = arith.constant 0 : i32
    %c0_i32_1 = arith.constant 0 : i32
    return %c0_i32, %c0_i32_0 : i32, i32
  }
  func.func @transform_4(%arg0: i32) -> (i32, i32) {
    %c0_i32 = arith.constant 0 : i32
    %c0_i32_0 = arith.constant 0 : i32
    %c0_i32_1 = arith.constant 0 : i32
    return %c0_i32, %c0_i32_0 : i32, i32
  }
  func.func @transform_5(%arg0: i32) -> (i32, i32) {
    %c0_i32 = arith.constant 0 : i32
    %c0_i32_0 = arith.constant 0 : i32
    return %arg0, %c0_i32 : i32, i32
  }
}

</mosaic_0001>

<llo_original>
// kernel: tpu_custom_call.1
$region0: #{tpu_custom_call.1}
  #allocation0 [shape = 'u32[]', space=smem, size = 0x4, offset = 0x4, fixed_abs, tag = 'smem constant byte address 0x4 - core index']
  #allocation1 [shape = 'u32[144,128]{1,0:T(1,128)}', space=vmem, size = 0x12000, scoped, tag = 'internal scratch']
  %s0 = inlined_call_operand.vmem [shape: f32[2,8], index: 0, kind: input, shape index: {}]
  %s1 = inlined_call_operand.vmem [shape: f32[8,64], index: 1, kind: input, shape index: {}]
  %s2 = inlined_call_operand.vmem [shape: f32[1,64], index: 2, kind: input, shape index: {}]
  %s3 = inlined_call_operand.vmem [shape: f32[64,32], index: 3, kind: input, shape index: {}]
  %s4 = inlined_call_operand.vmem [shape: f32[1,32], index: 4, kind: input, shape index: {}]
  %s5 = inlined_call_operand.hbm [shape: f32[2,32], index: 5, kind: output, shape index: {}]
  %s6 = sld [smem:[#allocation0]]
  $region30: #{tpu_custom_call.1} parent=0
    _
  %s8 = ssub.s32 1, %s6
  %s9 = scalar_select 0, %s8, %s6
  $region1: #{tpu_custom_call.1} parent=0
    #allocation2 [shape = 'u8[1024]{0}', space=vmem, size = 0x400, scoped, tag = 'output window, operand 0, single buffered']
    #allocation3 [shape = 's32[1]{0}', space=sflag, size = 0x4, scoped, tag = 'scoped memory for tpu_custom_call.1']
    %10 = vsyncpa [#allocation3], 0
    // Predicated region
    $region2: #{tpu_custom_call.1} parent=1 // pred_check
      _
    $region3: #{tpu_custom_call.1} parent=1 // pred_check_branch
      %12 = sbr.rel (0) target = $region5
    $region4: #{tpu_custom_call.1} parent=1 // pred_region
      _
    $region5: #{tpu_custom_call.1} parent=1 // pred_fallthru
      _
    // Predicated region
    $region6: #{tpu_custom_call.1} parent=1 // pred_check
      _
    $region7: #{tpu_custom_call.1} parent=1 // pred_check_branch
      %14 = sbr.rel (0) target = $region9
    $region8: #{tpu_custom_call.1} parent=1 // pred_region
      _
    $region9: #{tpu_custom_call.1} parent=1 // pred_fallthru
      _
    // Predicated region
    $region10: #{tpu_custom_call.1} parent=1 // pred_check
      _
    $region11: #{tpu_custom_call.1} parent=1 // pred_check_branch
      %16 = sbr.rel (0) target = $region13
    $region12: #{tpu_custom_call.1} parent=1 // pred_region
      _
    $region13: #{tpu_custom_call.1} parent=1 // pred_fallthru
      _
    // Predicated region
    $region14: #{tpu_custom_call.1} parent=1 // pred_check
      _
    $region15: #{tpu_custom_call.1} parent=1 // pred_check_branch
      %18 = sbr.rel (0) target = $region17
    $region16: #{tpu_custom_call.1} parent=1 // pred_region
      _
    $region17: #{tpu_custom_call.1} parent=1 // pred_fallthru
      _
    // Predicated region
    $region18: #{tpu_custom_call.1} parent=1 // pred_check
      _
    $region19: #{tpu_custom_call.1} parent=1 // pred_check_branch
      %20 = sbr.rel (0) target = $region21
    $region20: #{tpu_custom_call.1} parent=1 // pred_region
      _
    $region21: #{tpu_custom_call.1} parent=1 // pred_fallthru
      _
    %v21 = vld [vmem:[%s0] sm:$0x3]
    %v22 = vld [vmem:[%s1] sm:$0xff]
    %v23 = vld [vmem:[%s2] sm:$0x1]
    %v25 = vlaneseq
    %v26 = vshrl.u32 %v25, 7
    %v27 = vsub.s32 0, %v26
    %v28 = vrot.slane %v23, %v27
    %vm30 = vcmask 64512
    %v32 = vsel %vm30, %v21, 0
    %34 = vmatprep.subr.mxu0 0.0
    %35 = vmatpush1.msra.mxu0 %v22
    %36 = vmatprep.subr.mxu0 0.0
    %37 = vmatpush1.msra.mxu0 0.0
    %38 = vmatprep.subr.mxu0 0.0
    %39 = vmatpush1.msra.mxu0 0.0
    %40 = vmatprep.subr.mxu0 0.0
    %41 = vmatpush1.msra.mxu0 0.0
    %42 = vmatprep.subr.mxu0 0.0
    %43 = vmatpush1.msra.mxu0 0.0
    %44 = vmatprep.subr.mxu0 0.0
    %45 = vmatpush1.msra.mxu0 0.0
    %46 = vmatprep.subr.mxu0 0.0
    %47 = vmatpush1.msra.mxu0 0.0
    %48 = vmatprep.subr.mxu0 0.0
    %49 = vmatpush1.msra.mxu0 0.0
    %50 = vmatprep.subr.mxu0 0.0
    %51 = vmatpush1.msra.mxu0 0.0
    %52 = vmatprep.subr.mxu0 0.0
    %53 = vmatpush1.msra.mxu0 0.0
    %54 = vmatprep.subr.mxu0 0.0
    %55 = vmatpush1.msra.mxu0 0.0
    %56 = vmatprep.subr.mxu0 0.0
    %57 = vmatpush1.msra.mxu0 0.0
    %58 = vmatprep.subr.mxu0 0.0
    %59 = vmatpush1.msra.mxu0 0.0
    %60 = vmatprep.subr.mxu0 0.0
    %61 = vmatpush1.msra.mxu0 0.0
    %62 = vmatprep.subr.mxu0 0.0
    %63 = vmatpush1.msra.mxu0 0.0
    %64 = vmatprep.subr.mxu0 0.0
    %65 = vmatpush1.msra.mxu0 0.0
    %66 = vmatprep.subr.mxu0 0.0
    %67 = vmatpush1.msra.mxu0 0.0
    %68 = vmatprep.subr.mxu0 0.0
    %69 = vmatpush1.msra.mxu0 0.0
    %70 = vmatprep.subr.mxu0 0.0
    %71 = vmatpush1.msra.mxu0 0.0
    %72 = vmatprep.subr.mxu0 0.0
    %73 = vmatpush1.msra.mxu0 0.0
    %74 = vmatprep.subr.mxu0 0.0
    %75 = vmatpush1.msra.mxu0 0.0
    %76 = vmatprep.subr.mxu0 0.0
    %77 = vmatpush1.msra.mxu0 0.0
    %78 = vmatprep.subr.mxu0 0.0
    %79 = vmatpush1.msra.mxu0 0.0
    %80 = vmatprep.subr.mxu0 0.0
    %81 = vmatpush1.msra.mxu0 0.0
    %82 = vmatprep.subr.mxu0 0.0
    %83 = vmatpush1.msra.mxu0 0.0
    %84 = vmatprep.subr.mxu0 0.0
    %85 = vmatpush1.msra.mxu0 0.0
    %86 = vmatprep.subr.mxu0 0.0
    %87 = vmatpush1.msra.mxu0 0.0
    %88 = vmatprep.subr.mxu0 0.0
    %89 = vmatpush1.msra.mxu0 0.0
    %90 = vmatprep.subr.mxu0 0.0
    %91 = vmatpush1.msra.mxu0 0.0
    %92 = vmatprep.subr.mxu0 0.0
    %93 = vmatpush1.msra.mxu0 0.0
    %94 = vmatprep.subr.mxu0 0.0
    %95 = vmatpush1.msra.mxu0 0.0
    %96 = vmatprep.subr.mxu0 0.0
    %97 = vmatpush1.msra.mxu0 0.0
    %98 = vmatprep.mubr.f32.mxu0 0.0
    %99 = vmatmul.mubr.f32.gmra.mrb[0].mxu0 %v32
    %v100 = vpop.f32.mrb[0].mxu0
    %v101 = vadd.f32 %v28, %v100
    %v102 = vpop.f32.mrb[0].mxu0
    %103 = vdwg.mxu0
    %v104 = vmax.f32 %v101, 0.0
    %v105 = vld [vmem:[%s3] sm:$0xff]
    %v106 = vld [vmem:[%s3 + $0x8] sm:$0xff]
    %v107 = vld [vmem:[%s3 + $0x10] sm:$0xff]
    %v108 = vld [vmem:[%s3 + $0x18] sm:$0xff]
    %v109 = vld [vmem:[%s3 + $0x20] sm:$0xff]
    %v110 = vld [vmem:[%s3 + $0x28] sm:$0xff]
    %v111 = vld [vmem:[%s3 + $0x30] sm:$0xff]
    %v112 = vld [vmem:[%s3 + $0x38] sm:$0xff]
    %v113 = vld [vmem:[%s4] sm:$0x1]
    %v115 = vlaneseq
    %v116 = vshrl.u32 %v115, 7
    %v117 = vsub.s32 0, %v116
    %v118 = vrot.slane %v113, %v117
    %vm120 = vcmask 523264
    %v122 = vsel %vm120, %v104, 0
    %124 = vmatprep.subr.mxu0 0.0
    %125 = vmatpush1.msra.mxu0 %v105
    %126 = vmatprep.subr.mxu0 0.0
    %127 = vmatpush1.msra.mxu0 %v106
    %128 = vmatprep.subr.mxu0 0.0
    %129 = vmatpush1.msra.mxu0 %v107
    %130 = vmatprep.subr.mxu0 0.0
    %131 = vmatpush1.msra.mxu0 %v108
    %132 = vmatprep.subr.mxu0 0.0
    %133 = vmatpush1.msra.mxu0 %v109
    %134 = vmatprep.subr.mxu0 0.0
    %135 = vmatpush1.msra.mxu0 %v110
    %136 = vmatprep.subr.mxu0 0.0
    %137 = vmatpush1.msra.mxu0 %v111
    %138 = vmatprep.subr.mxu0 0.0
    %139 = vmatpush1.msra.mxu0 %v112
    %140 = vmatprep.subr.mxu0 0.0
    %141 = vmatpush1.msra.mxu0 0.0
    %142 = vmatprep.subr.mxu0 0.0
    %143 = vmatpush1.msra.mxu0 0.0
    %144 = vmatprep.subr.mxu0 0.0
    %145 = vmatpush1.msra.mxu0 0.0
    %146 = vmatprep.subr.mxu0 0.0
    %147 = vmatpush1.msra.mxu0 0.0
    %148 = vmatprep.subr.mxu0 0.0
    %149 = vmatpush1.msra.mxu0 0.0
    %150 = vmatprep.subr.mxu0 0.0
    %151 = vmatpush1.msra.mxu0 0.0
    %152 = vmatprep.subr.mxu0 0.0
    %153 = vmatpush1.msra.mxu0 0.0
    %154 = vmatprep.subr.mxu0 0.0
    %155 = vmatpush1.msra.mxu0 0.0
    %156 = vmatprep.subr.mxu0 0.0
    %157 = vmatpush1.msra.mxu0 0.0
    %158 = vmatprep.subr.mxu0 0.0
    %159 = vmatpush1.msra.mxu0 0.0
    %160 = vmatprep.subr.mxu0 0.0
    %161 = vmatpush1.msra.mxu0 0.0
    %162 = vmatprep.subr.mxu0 0.0
    %163 = vmatpush1.msra.mxu0 0.0
    %164 = vmatprep.subr.mxu0 0.0
    %165 = vmatpush1.msra.mxu0 0.0
    %166 = vmatprep.subr.mxu0 0.0
    %167 = vmatpush1.msra.mxu0 0.0
    %168 = vmatprep.subr.mxu0 0.0
    %169 = vmatpush1.msra.mxu0 0.0
    %170 = vmatprep.subr.mxu0 0.0
    %171 = vmatpush1.msra.mxu0 0.0
    %172 = vmatprep.subr.mxu0 0.0
    %173 = vmatpush1.msra.mxu0 0.0
    %174 = vmatprep.subr.mxu0 0.0
    %175 = vmatpush1.msra.mxu0 0.0
    %176 = vmatprep.subr.mxu0 0.0
    %177 = vmatpush1.msra.mxu0 0.0
    %178 = vmatprep.subr.mxu0 0.0
    %179 = vmatpush1.msra.mxu0 0.0
    %180 = vmatprep.subr.mxu0 0.0
    %181 = vmatpush1.msra.mxu0 0.0
    %182 = vmatprep.subr.mxu0 0.0
    %183 = vmatpush1.msra.mxu0 0.0
    %184 = vmatprep.subr.mxu0 0.0
    %185 = vmatpush1.msra.mxu0 0.0
    %186 = vmatprep.subr.mxu0 0.0
    %187 = vmatpush1.msra.mxu0 0.0
    %188 = vmatprep.mubr.f32.mxu0 0.0
    %189 = vmatmul.mubr.f32.gmra.mrb[0].mxu0 %v122
    %v190 = vpop.f32.mrb[0].mxu0
    %v191 = vadd.f32 %v118, %v190
    %v192 = vpop.f32.mrb[0].mxu0
    %193 = vdwg.mxu0
    %vm194 = vcmask 254976
    %195 = vst.msk [vmem:[#allocation2] sm:$0x3] %vm194, %v191
    // Predicated region
    $region22: #{tpu_custom_call.1} parent=1 // pred_check
      _
    $region23: #{tpu_custom_call.1} parent=1 // pred_check_branch
      %197 = sbr.rel (0) target = $region25
    $region24: #{tpu_custom_call.1} parent=1 // pred_region
      %s199 = ssub.s32 32, 32
      %200 = vsyncadd [#allocation3], %s199
      %s202 = sshll.u32 [#allocation2], 4
      %s203 = int_to_ptr.vmem [resolvable:$true] %s202
      %205 = dma.vmem_to_hbm [thread:$0]  %s203, 32, %s5, [#allocation3]
    $region25: #{tpu_custom_call.1} parent=1 // pred_fallthru
      _
    // Predicated region
    $region26: #{tpu_custom_call.1} parent=1 // pred_check
      _
    $region27: #{tpu_custom_call.1} parent=1 // pred_check_branch
      %207 = sbr.rel (0) target = $region29
    $region28: #{tpu_custom_call.1} parent=1 // pred_region
      %208 = dma.done [#allocation3], 32
    $region29: #{tpu_custom_call.1} parent=1 // pred_fallthru
      _
    %209 = vsyncpa [#allocation3], 1

</llo_original>
